<compile_context>
chip_gen: v7x
topology: tpu7x:2x2x1
jax: 0.10.0
libtpu: 0.0.40
codegen_flags: <defaults>
</compile_context>

<pallas_src>
import functools

import jax
import jax.numpy as jnp
from jax.experimental import pallas as pl
from jax.experimental.pallas import tpu as pltpu


def _round_up(x, m):
    return ((x + m - 1) // m) * m


def _dl_kernel(n_hidden, *refs):
    # refs = (x_ref, wh_0, ..., wh_{n_hidden-1}, wf_ref, b_ref, o_ref)
    x_ref = refs[0]
    hidden_refs = refs[1:1 + n_hidden]
    wf_ref = refs[1 + n_hidden]
    b_ref = refs[2 + n_hidden]
    o_ref = refs[3 + n_hidden]

    h = x_ref[...]                                     # bf16 tile (TB, Dp)
    for wh_ref in hidden_refs:                         # static unrolled layer loop
        acc = jnp.dot(h, wh_ref[...],                  # MXU, bf16 x bf16 -> f32 acc
                      preferred_element_type=jnp.float32)
        h = jnp.tanh(acc).astype(jnp.bfloat16)         # tanh in f32 (EUP), recast for MXU
    out = jnp.dot(h, wf_ref[...], preferred_element_type=jnp.float32)
    out = out + b_ref[...]                             # (1, Op) f32 bias, broadcast over rows
    o_ref[...] = out.astype(o_ref.dtype)               # lane-dense (Op % 128 == 0) store


def dl_forward(x, hidden_ws, final_w, final_b, *, batch_tile=256):
    """Full DL forward pass in a single batch-tiled Pallas kernel.

    x:         (B, D)  float32
    hidden_ws: list of (D, D) float32  (already transposed: y = x @ W)
    final_w:   (D, O)  float32         (already transposed)
    final_b:   (O,)    float32
    """
    B, D = x.shape
    O = final_w.shape[1]
    n_hidden = len(hidden_ws)

    # ---- pad to TPU-friendly shapes -------------------------------------
    Dp = _round_up(D, 128)                 # lane-dense features
    Op = _round_up(O, 128)                 # lane-dense output -> unmasked vst
    TB = min(batch_tile, _round_up(B, 8))  # batch tile, multiple of 8 sublanes
    TB = _round_up(TB, 8)
    Bp = _round_up(B, TB)

    act_dt = jnp.bfloat16
    x_p = jnp.zeros((Bp, Dp), act_dt).at[:B, :D].set(x.astype(act_dt))
    whs_p = [jnp.zeros((Dp, Dp), act_dt).at[:D, :D].set(w.astype(act_dt))
             for w in hidden_ws]
    wf_p = jnp.zeros((Dp, Op), act_dt).at[:D, :O].set(final_w.astype(act_dt))
    b_p = jnp.zeros((1, Op), jnp.float32).at[0, :O].set(final_b.astype(jnp.float32))

    # ---- specs: stream x/out over the batch grid, keep weights resident --
    grid = (Bp // TB,)
    in_specs = [pl.BlockSpec((TB, Dp), lambda i: (i, 0))]                 # x tile (streamed)
    in_specs += [pl.BlockSpec((Dp, Dp), lambda i: (0, 0))] * n_hidden     # hidden W (resident)
    in_specs += [pl.BlockSpec((Dp, Op), lambda i: (0, 0)),                # final W (resident)
                 pl.BlockSpec((1, Op), lambda i: (0, 0))]                 # bias (resident)
    out_specs = pl.BlockSpec((TB, Op), lambda i: (i, 0))

    # ---- cost hint + VMEM budget -----------------------------------------
    weight_bytes = n_hidden * Dp * Dp * 2 + Dp * Op * 2 + Op * 4
    io_bytes = Bp * Dp * 2 + Bp * Op * 4
    cost = pl.CostEstimate(
        flops=2 * Bp * Dp * (Dp * n_hidden + Op),
        transcendentals=Bp * Dp * n_hidden,
        bytes_accessed=weight_bytes + io_bytes,
    )
    # per-step VMEM: resident weights + double-buffered x/out tiles
    est_vmem = weight_bytes + 2 * (TB * Dp * 2) + 2 * (TB * Op * 4)
    vmem_limit = None
    if 2 * est_vmem > 16 * 1024 * 1024:    # only raise above the smallest default (v5e)
        # cap at a v7x-safe value (64 MiB physical VMEM per TensorCore)
        vmem_limit = int(min(60 * 1024 * 1024, 2 * est_vmem))

    out_p = pl.pallas_call(
        functools.partial(_dl_kernel, n_hidden),
        out_shape=jax.ShapeDtypeStruct((Bp, Op), jnp.float32),
        grid=grid,
        in_specs=in_specs,
        out_specs=out_specs,
        compiler_params=pltpu.CompilerParams(
            dimension_semantics=("parallel",),
            vmem_limit_bytes=vmem_limit,
        ),
        cost_estimate=cost,
    )(x_p, *whs_p, wf_p, b_p)

    return out_p[:B, :O]


def init_dl_params(key, input_size, output_size, n_lls):
    """Deterministic init mimicking nn.Linear's U(-1/sqrt(fan_in), 1/sqrt(fan_in))."""
    params = {"hidden": [], "final_w": None, "final_b": None}
    bound = 1.0 / jnp.sqrt(jnp.float32(input_size))
    for _ in range(n_lls - 1):
        key, sub = jax.random.split(key)
        # torch weight is (out, in); store transposed (in, out) for y = x @ W.
        w = jax.random.uniform(sub, (input_size, input_size),
                               minval=-bound, maxval=bound, dtype=jnp.float32)
        params["hidden"].append(w)
    key, kw, kb = jax.random.split(key, 3)
    params["final_w"] = jax.random.uniform(kw, (input_size, output_size),
                                           minval=-bound, maxval=bound,
                                           dtype=jnp.float32)
    params["final_b"] = jax.random.uniform(kb, (output_size,),
                                           minval=-bound, maxval=bound,
                                           dtype=jnp.float32)
    return params


def dl_reference_f32(x, params):
    """Pure-JAX f32 reference of the same forward pass."""
    h = x
    for w in params["hidden"]:
        h = jnp.tanh(h @ w)
    return h @ params["final_w"] + params["final_b"]


def dl_reference_bf16(x, params):
    """Pure-JAX reference matching the kernel's bf16-matmul / f32-accumulate math."""
    h = x.astype(jnp.bfloat16)
    for w in params["hidden"]:
        acc = jnp.dot(h, w.astype(jnp.bfloat16), preferred_element_type=jnp.float32)
        h = jnp.tanh(acc).astype(jnp.bfloat16)
    out = jnp.dot(h, params["final_w"].astype(jnp.bfloat16),
                  preferred_element_type=jnp.float32)
    return out + params["final_b"].astype(jnp.float32)


if __name__ == "__main__":
    # Small shapes consistent with the module (flattened-MNIST-like, scaled down).
    batch = 8
    input_size = 32
    output_size = 16
    n_lls = 3  # -> 2 hidden (bias-free) tanh layers + final biased layer

    key = jax.random.PRNGKey(0)
    key, kx = jax.random.split(key)
    x = jax.random.normal(kx, (batch, input_size), dtype=jnp.float32)

    params = init_dl_params(key, input_size, output_size, n_lls)

    out = dl_forward(x, params["hidden"], params["final_w"], params["final_b"])
    out = jax.block_until_ready(out)

    assert out.shape == (batch, output_size)

    ref_bf16 = dl_reference_bf16(x, params)
    ref_f32 = dl_reference_f32(x, params)
    # Tight check vs. a reference using identical bf16-matmul / f32-accumulate math.
    assert jnp.allclose(out, ref_bf16, atol=5e-3, rtol=5e-3)
    # Loose check vs. the pure-f32 reference (bf16 quantization noise only).
    assert jnp.allclose(out, ref_f32, atol=5e-2, rtol=5e-2)

    print("KERNEL_OK")
</pallas_src>

<mosaic_0001>
module attributes {stable_mosaic.version = 11 : i64} {
  func.func @_dl_kernel(%arg0: i32, %arg1: memref<8x128xbf16, #tpu.memory_space<vmem>>, %arg2: memref<128x128xbf16, #tpu.memory_space<vmem>>, %arg3: memref<128x128xbf16, #tpu.memory_space<vmem>>, %arg4: memref<128x128xbf16, #tpu.memory_space<vmem>>, %arg5: memref<1x128xf32, #tpu.memory_space<vmem>>, %arg6: memref<8x128xf32, #tpu.memory_space<vmem>>) attributes {dimension_semantics = [#tpu.dimension_semantics<parallel>], iteration_bounds = array<i64: 1>, scalar_prefetch = 0 : i64, scratch_operands = 0 : i64, tpu.core_type = #tpu.core_type<tc>, window_params = [{transform_indices = @transform_0, window_bounds = array<i64: 8, 128>}, {pipeline_mode = #tpu.pipeline_mode<synchronous>, transform_indices = @transform_1, window_bounds = array<i64: 128, 128>}, {pipeline_mode = #tpu.pipeline_mode<synchronous>, transform_indices = @transform_2, window_bounds = array<i64: 128, 128>}, {pipeline_mode = #tpu.pipeline_mode<synchronous>, transform_indices = @transform_3, window_bounds = array<i64: 128, 128>}, {pipeline_mode = #tpu.pipeline_mode<synchronous>, transform_indices = @transform_4, window_bounds = array<i64: 1, 128>}, {transform_indices = @transform_5, window_bounds = array<i64: 8, 128>}]} {
    %c0 = arith.constant 0 : index
    %c0_0 = arith.constant 0 : index
    %0 = vector.load %arg1[%c0, %c0_0] : memref<8x128xbf16, #tpu.memory_space<vmem>>, vector<8x128xbf16>
    %c0_1 = arith.constant 0 : index
    %c0_2 = arith.constant 0 : index
    %1 = vector.load %arg2[%c0_1, %c0_2] : memref<128x128xbf16, #tpu.memory_space<vmem>>, vector<128x128xbf16>
    %cst = arith.constant dense<0.000000e+00> : vector<8x128xf32>
    %2 = tpu.matmul %0, %1, %cst {dimension_numbers = #tpu.dot_dimension_numbers<[1], [0], [0], [1], [0, 0, 1, 1], [], []>} : vector<8x128xbf16>, vector<128x128xbf16>, vector<8x128xf32> -> vector<8x128xf32>
    %3 = math.tanh %2 : vector<8x128xf32>
    %4 = arith.truncf %3 : vector<8x128xf32> to vector<8x128xbf16>
    %c0_3 = arith.constant 0 : index
    %c0_4 = arith.constant 0 : index
    %5 = vector.load %arg3[%c0_3, %c0_4] : memref<128x128xbf16, #tpu.memory_space<vmem>>, vector<128x128xbf16>
    %cst_5 = arith.constant dense<0.000000e+00> : vector<8x128xf32>
    %6 = tpu.matmul %4, %5, %cst_5 {dimension_numbers = #tpu.dot_dimension_numbers<[1], [0], [0], [1], [0, 0, 1, 1], [], []>} : vector<8x128xbf16>, vector<128x128xbf16>, vector<8x128xf32> -> vector<8x128xf32>
    %7 = math.tanh %6 : vector<8x128xf32>
    %8 = arith.truncf %7 : vector<8x128xf32> to vector<8x128xbf16>
    %c0_6 = arith.constant 0 : index
    %c0_7 = arith.constant 0 : index
    %9 = vector.load %arg4[%c0_6, %c0_7] : memref<128x128xbf16, #tpu.memory_space<vmem>>, vector<128x128xbf16>
    %cst_8 = arith.constant dense<0.000000e+00> : vector<8x128xf32>
    %10 = tpu.matmul %8, %9, %cst_8 {dimension_numbers = #tpu.dot_dimension_numbers<[1], [0], [0], [1], [0, 0, 1, 1], [], []>} : vector<8x128xbf16>, vector<128x128xbf16>, vector<8x128xf32> -> vector<8x128xf32>
    %c0_9 = arith.constant 0 : index
    %c0_10 = arith.constant 0 : index
    %11 = vector.load %arg5[%c0_9, %c0_10] : memref<1x128xf32, #tpu.memory_space<vmem>>, vector<1x128xf32>
    %12 = vector.broadcast %11 : vector<1x128xf32> to vector<8x128xf32>
    %13 = arith.addf %10, %12 : vector<8x128xf32>
    %c0_11 = arith.constant 0 : index
    %c0_12 = arith.constant 0 : index
    %14 = vector.load %arg6[%c0_11, %c0_12] : memref<8x128xf32, #tpu.memory_space<vmem>>, vector<8x128xf32>
    tpu.vector_store %arg6[%c0_11, %c0_12], %13 {strides = array<i32>} : memref<8x128xf32, #tpu.memory_space<vmem>>, vector<8x128xf32>,
    return
  }
  func.func @transform_0(%arg0: i32) -> (i32, i32) {
    %c0_i32 = arith.constant 0 : i32
    %c0_i32_0 = arith.constant 0 : i32
    return %arg0, %c0_i32 : i32, i32
  }
  func.func @transform_1(%arg0: i32) -> (i32, i32) {
    %c0_i32 = arith.constant 0 : i32
    %c0_i32_0 = arith.constant 0 : i32
    %c0_i32_1 = arith.constant 0 : i32
    return %c0_i32, %c0_i32_0 : i32, i32
  }
  func.func @transform_2(%arg0: i32) -> (i32, i32) {
    %c0_i32 = arith.constant 0 : i32
    %c0_i32_0 = arith.constant 0 : i32
    %c0_i32_1 = arith.constant 0 : i32
    return %c0_i32, %c0_i32_0 : i32, i32
  }
  func.func @transform_3(%arg0: i32) -> (i32, i32) {
    %c0_i32 = arith.constant 0 : i32
    %c0_i32_0 = arith.constant 0 : i32
    %c0_i32_1 = arith.constant 0 : i32
    return %c0_i32, %c0_i32_0 : i32, i32
  }
  func.func @transform_4(%arg0: i32) -> (i32, i32) {
    %c0_i32 = arith.constant 0 : i32
    %c0_i32_0 = arith.constant 0 : i32
    %c0_i32_1 = arith.constant 0 : i32
    return %c0_i32, %c0_i32_0 : i32, i32
  }
  func.func @transform_5(%arg0: i32) -> (i32, i32) {
    %c0_i32 = arith.constant 0 : i32
    %c0_i32_0 = arith.constant 0 : i32
    return %arg0, %c0_i32 : i32, i32
  }
}

</mosaic_0001>

<llo_original>
// kernel: tpu_custom_call.1
$region0: #{tpu_custom_call.1}
  #allocation0 [shape = 'u32[]', space=smem, size = 0x4, offset = 0x4, fixed_abs, tag = 'smem constant byte address 0x4 - core index']
  #allocation1 [shape = 'u32[144,128]{1,0:T(1,128)}', space=vmem, size = 0x12000, scoped, tag = 'internal scratch']
  %s0 = inlined_call_operand.hbm [shape: bf16[8,128], index: 0, kind: input, shape index: {}]
  %s1 = inlined_call_operand.hbm [shape: bf16[128,128], index: 1, kind: input, shape index: {}]
  %s2 = inlined_call_operand.hbm [shape: bf16[128,128], index: 2, kind: input, shape index: {}]
  %s3 = inlined_call_operand.hbm [shape: bf16[128,128], index: 3, kind: input, shape index: {}]
  %s4 = inlined_call_operand.vmem [shape: f32[1,128], index: 4, kind: input, shape index: {}]
  %s5 = inlined_call_operand.hbm [shape: f32[8,128], index: 5, kind: output, shape index: {}]
  %s6 = sld [smem:[#allocation0]]
  $region46: #{tpu_custom_call.1} parent=0
    _
  %s8 = ssub.s32 1, %s6
  %s9 = scalar_select 0, %s8, %s6
  $region1: #{tpu_custom_call.1} parent=0
    #allocation2 [shape = 'u8[2048]{0}', space=vmem, size = 0x800, scoped, tag = 'input window, operand 0, single buffered']
    #allocation3 [shape = 's32[1]{0}', space=sflag, size = 0x4, scoped, tag = 'scoped memory for tpu_custom_call.1']
    #allocation4 [shape = 's32[1]{0}', space=sflag, size = 0x4, scoped, tag = 'scoped memory for tpu_custom_call.1']
    #allocation5 [shape = 'u8[32768]{0}', space=vmem, size = 0x8000, scoped, tag = 'input window, operand 1, single buffered']
    #allocation6 [shape = 's32[1]{0}', space=sflag, size = 0x4, scoped, tag = 'scoped memory for tpu_custom_call.1']
    #allocation7 [shape = 'u8[32768]{0}', space=vmem, size = 0x8000, scoped, tag = 'input window, operand 2, single buffered']
    #allocation8 [shape = 'u8[32768]{0}', space=vmem, size = 0x8000, scoped, tag = 'input window, operand 3, single buffered']
    #allocation9 [shape = 's32[1]{0}', space=sflag, size = 0x4, scoped, tag = 'scoped memory for tpu_custom_call.1']
    #allocation10 [shape = 'u8[4096]{0}', space=vmem, size = 0x1000, scoped, tag = 'output window, operand 0, single buffered']
    %10 = vsyncpa [#allocation3], 0
    %11 = vsyncpa [#allocation6], 0
    %12 = vsyncpa [#allocation9], 0
    %13 = vsyncpa [#allocation4], 0
    // Predicated region
    $region2: #{tpu_custom_call.1} parent=1 // pred_check
      _
    $region3: #{tpu_custom_call.1} parent=1 // pred_check_branch
      %15 = sbr.rel (0) target = $region5
    $region4: #{tpu_custom_call.1} parent=1 // pred_region
      %s17 = ssub.s32 64, 64
      %18 = vsyncadd [#allocation3], %s17
      %s20 = sshll.u32 [#allocation2], 4
      %s21 = int_to_ptr.vmem [resolvable:$true] %s20
      %23 = dma.hbm_to_vmem [thread:$0]  %s0, 64, %s21, [#allocation3]
    $region5: #{tpu_custom_call.1} parent=1 // pred_fallthru
      _
    // Predicated region
    $region6: #{tpu_custom_call.1} parent=1 // pred_check
      _
    $region7: #{tpu_custom_call.1} parent=1 // pred_check_branch
      %25 = sbr.rel (0) target = $region9
    $region8: #{tpu_custom_call.1} parent=1 // pred_region
      %s27 = ssub.s32 1024, 1024
      %28 = vsyncadd [#allocation6], %s27
      %s29 = sshll.u32 [#allocation5], 4
      %s30 = int_to_ptr.vmem [resolvable:$true] %s29
      %35 = dma.hbm_to_vmem [thread:$0]  %s1, 1024, %s30, [#allocation6], 64, 64, 4
    $region9: #{tpu_custom_call.1} parent=1 // pred_fallthru
      _
    // Predicated region
    $region10: #{tpu_custom_call.1} parent=1 // pred_check
      _
    $region11: #{tpu_custom_call.1} parent=1 // pred_check_branch
      %37 = sbr.rel (0) target = $region13
    $region12: #{tpu_custom_call.1} parent=1 // pred_region
      %s39 = ssub.s32 1024, 1024
      %40 = vsyncadd [#allocation6], %s39
      %s41 = sshll.u32 [#allocation7], 4
      %s42 = int_to_ptr.vmem [resolvable:$true] %s41
      %47 = dma.hbm_to_vmem [thread:$0]  %s2, 1024, %s42, [#allocation6], 64, 64, 4
    $region13: #{tpu_custom_call.1} parent=1 // pred_fallthru
      _
    // Predicated region
    $region14: #{tpu_custom_call.1} parent=1 // pred_check
      _
    $region15: #{tpu_custom_call.1} parent=1 // pred_check_branch
      %49 = sbr.rel (0) target = $region17
    $region16: #{tpu_custom_call.1} parent=1 // pred_region
      %s51 = ssub.s32 1024, 1024
      %52 = vsyncadd [#allocation9], %s51
      %s53 = sshll.u32 [#allocation8], 4
      %s54 = int_to_ptr.vmem [resolvable:$true] %s53
      %59 = dma.hbm_to_vmem [thread:$0]  %s3, 1024, %s54, [#allocation9], 64, 64, 4
    $region17: #{tpu_custom_call.1} parent=1 // pred_fallthru
      _
    // Predicated region
    $region18: #{tpu_custom_call.1} parent=1 // pred_check
      _
    $region19: #{tpu_custom_call.1} parent=1 // pred_check_branch
      %61 = sbr.rel (0) target = $region21
    $region20: #{tpu_custom_call.1} parent=1 // pred_region
      _
    $region21: #{tpu_custom_call.1} parent=1 // pred_fallthru
      _
    // Predicated region
    $region22: #{tpu_custom_call.1} parent=1 // pred_check
      _
    $region23: #{tpu_custom_call.1} parent=1 // pred_check_branch
      %63 = sbr.rel (0) target = $region25
    $region24: #{tpu_custom_call.1} parent=1 // pred_region
      %64 = dma.done [#allocation3], 64
    $region25: #{tpu_custom_call.1} parent=1 // pred_fallthru
      _
    // Predicated region
    $region26: #{tpu_custom_call.1} parent=1 // pred_check
      _
    $region27: #{tpu_custom_call.1} parent=1 // pred_check_branch
      %66 = sbr.rel (0) target = $region29
    $region28: #{tpu_custom_call.1} parent=1 // pred_region
      %67 = dma.done [#allocation6], 1024
    $region29: #{tpu_custom_call.1} parent=1 // pred_fallthru
      _
    // Predicated region
    $region30: #{tpu_custom_call.1} parent=1 // pred_check
      _
    $region31: #{tpu_custom_call.1} parent=1 // pred_check_branch
      %69 = sbr.rel (0) target = $region33
    $region32: #{tpu_custom_call.1} parent=1 // pred_region
      %70 = dma.done [#allocation6], 1024
    $region33: #{tpu_custom_call.1} parent=1 // pred_fallthru
      _
    // Predicated region
    $region34: #{tpu_custom_call.1} parent=1 // pred_check
      _
    $region35: #{tpu_custom_call.1} parent=1 // pred_check_branch
      %72 = sbr.rel (0) target = $region37
    $region36: #{tpu_custom_call.1} parent=1 // pred_region
      %73 = dma.done [#allocation9], 1024
    $region37: #{tpu_custom_call.1} parent=1 // pred_fallthru
      _
    %v75 = vld [vmem:[#allocation2] sm:$0xf]
    %v76 = vld [vmem:[#allocation5] sm:$0xf]
    %v77 = vld [vmem:[#allocation5 + $0x4] sm:$0xf]
    %v78 = vld [vmem:[#allocation5 + $0x8] sm:$0xf]
    %v79 = vld [vmem:[#allocation5 + $0xc] sm:$0xf]
    %v80 = vld [vmem:[#allocation5 + $0x10] sm:$0xf]
    %v81 = vld [vmem:[#allocation5 + $0x14] sm:$0xf]
    %v82 = vld [vmem:[#allocation5 + $0x18] sm:$0xf]
    %v83 = vld [vmem:[#allocation5 + $0x1c] sm:$0xf]
    %v84 = vld [vmem:[#allocation5 + $0x20] sm:$0xf]
    %v85 = vld [vmem:[#allocation5 + $0x24] sm:$0xf]
    %v86 = vld [vmem:[#allocation5 + $0x28] sm:$0xf]
    %v87 = vld [vmem:[#allocation5 + $0x2c] sm:$0xf]
    %v88 = vld [vmem:[#allocation5 + $0x30] sm:$0xf]
    %v89 = vld [vmem:[#allocation5 + $0x34] sm:$0xf]
    %v90 = vld [vmem:[#allocation5 + $0x38] sm:$0xf]
    %v91 = vld [vmem:[#allocation5 + $0x3c] sm:$0xf]
    %v108 = vunpack.c.l.b16 %v76
    %v109 = vunpack.c.l.b16 %v77
    %v110 = vunpack.c.l.b16 %v78
    %v111 = vunpack.c.l.b16 %v79
    %v112 = vunpack.c.l.b16 %v80
    %v113 = vunpack.c.l.b16 %v81
    %v114 = vunpack.c.l.b16 %v82
    %v115 = vunpack.c.l.b16 %v83
    %v116 = vunpack.c.l.b16 %v84
    %v117 = vunpack.c.l.b16 %v85
    %v118 = vunpack.c.l.b16 %v86
    %v119 = vunpack.c.l.b16 %v87
    %v120 = vunpack.c.l.b16 %v88
    %v121 = vunpack.c.l.b16 %v89
    %v122 = vunpack.c.l.b16 %v90
    %v123 = vunpack.c.l.b16 %v91
    %v124 = vpack.c.b16 %v109, %v108
    %v125 = vpack.c.b16 %v111, %v110
    %v126 = vpack.c.b16 %v113, %v112
    %v127 = vpack.c.b16 %v115, %v114
    %v128 = vpack.c.b16 %v117, %v116
    %v129 = vpack.c.b16 %v119, %v118
    %v130 = vpack.c.b16 %v121, %v120
    %v131 = vpack.c.b16 %v123, %v122
    %140 = vmatprep.subr.bf16.mxu0 0
    %141 = vmatpush1.bf16.msra.mxu0 %v124
    %142 = vmatprep.subr.bf16.mxu0 0
    %143 = vmatpush1.bf16.msra.mxu0 %v125
    %144 = vmatprep.subr.bf16.mxu0 0
    %145 = vmatpush1.bf16.msra.mxu0 %v126
    %146 = vmatprep.subr.bf16.mxu0 0
    %147 = vmatpush1.bf16.msra.mxu0 %v127
    %148 = vmatprep.subr.bf16.mxu0 0
    %149 = vmatpush1.bf16.msra.mxu0 %v128
    %150 = vmatprep.subr.bf16.mxu0 0
    %151 = vmatpush1.bf16.msra.mxu0 %v129
    %152 = vmatprep.subr.bf16.mxu0 0
    %153 = vmatpush1.bf16.msra.mxu0 %v130
    %154 = vmatprep.subr.bf16.mxu0 0
    %155 = vmatpush1.bf16.msra.mxu0 %v131
    %156 = vmatprep.subr.bf16.mxu0 0
    %157 = vmatpush1.bf16.msra.mxu0 0
    %158 = vmatprep.subr.bf16.mxu0 0
    %159 = vmatpush1.bf16.msra.mxu0 0
    %160 = vmatprep.subr.bf16.mxu0 0
    %161 = vmatpush1.bf16.msra.mxu0 0
    %162 = vmatprep.subr.bf16.mxu0 0
    %163 = vmatpush1.bf16.msra.mxu0 0
    %164 = vmatprep.subr.bf16.mxu0 0
    %165 = vmatpush1.bf16.msra.mxu0 0
    %166 = vmatprep.subr.bf16.mxu0 0
    %167 = vmatpush1.bf16.msra.mxu0 0
    %168 = vmatprep.subr.bf16.mxu0 0
    %169 = vmatpush1.bf16.msra.mxu0 0
    %170 = vmatprep.subr.bf16.mxu0 0
    %171 = vmatpush1.bf16.msra.mxu0 0
    %172 = vmatprep.mubr.bf16.mxu0 0
    %173 = vmatmul.mubr.bf16.gmra.mrb[0].mxu0 %v75
    %v174 = vpop.f32.mrb[0].mxu0
    %v175 = vadd.f32 0.0, %v174
    %v176 = vpop.f32.mrb[0].mxu0
    %v177 = vpop.f32.mrb[0].mxu0
    %v178 = vpop.f32.mrb[0].mxu0
    %179 = vdwg.mxu0
    %v180 = vtanh.pop %v175
    %v181 = vpack.c.bf16 %v180, %v180
    %v182 = vld [vmem:[#allocation7] sm:$0xf]
    %v183 = vld [vmem:[#allocation7 + $0x4] sm:$0xf]
    %v184 = vld [vmem:[#allocation7 + $0x8] sm:$0xf]
    %v185 = vld [vmem:[#allocation7 + $0xc] sm:$0xf]
    %v186 = vld [vmem:[#allocation7 + $0x10] sm:$0xf]
    %v187 = vld [vmem:[#allocation7 + $0x14] sm:$0xf]
    %v188 = vld [vmem:[#allocation7 + $0x18] sm:$0xf]
    %v189 = vld [vmem:[#allocation7 + $0x1c] sm:$0xf]
    %v190 = vld [vmem:[#allocation7 + $0x20] sm:$0xf]
    %v191 = vld [vmem:[#allocation7 + $0x24] sm:$0xf]
    %v192 = vld [vmem:[#allocation7 + $0x28] sm:$0xf]
    %v193 = vld [vmem:[#allocation7 + $0x2c] sm:$0xf]
    %v194 = vld [vmem:[#allocation7 + $0x30] sm:$0xf]
    %v195 = vld [vmem:[#allocation7 + $0x34] sm:$0xf]
    %v196 = vld [vmem:[#allocation7 + $0x38] sm:$0xf]
    %v197 = vld [vmem:[#allocation7 + $0x3c] sm:$0xf]
    %v214 = vunpack.c.l.b16 %v182
    %v215 = vunpack.c.l.b16 %v183
    %v216 = vunpack.c.l.b16 %v184
    %v217 = vunpack.c.l.b16 %v185
    %v218 = vunpack.c.l.b16 %v186
    %v219 = vunpack.c.l.b16 %v187
    %v220 = vunpack.c.l.b16 %v188
    %v221 = vunpack.c.l.b16 %v189
    %v222 = vunpack.c.l.b16 %v190
    %v223 = vunpack.c.l.b16 %v191
    %v224 = vunpack.c.l.b16 %v192
    %v225 = vunpack.c.l.b16 %v193
    %v226 = vunpack.c.l.b16 %v194
    %v227 = vunpack.c.l.b16 %v195
    %v228 = vunpack.c.l.b16 %v196
    %v229 = vunpack.c.l.b16 %v197
    %v230 = vpack.c.b16 %v215, %v214
    %v231 = vpack.c.b16 %v217, %v216
    %v232 = vpack.c.b16 %v219, %v218
    %v233 = vpack.c.b16 %v221, %v220
    %v234 = vpack.c.b16 %v223, %v222
    %v235 = vpack.c.b16 %v225, %v224
    %v236 = vpack.c.b16 %v227, %v226
    %v237 = vpack.c.b16 %v229, %v228
    %246 = vmatprep.subr.bf16.mxu0 0
    %247 = vmatpush1.bf16.msra.mxu0 %v230
    %248 = vmatprep.subr.bf16.mxu0 0
    %249 = vmatpush1.bf16.msra.mxu0 %v231
    %250 = vmatprep.subr.bf16.mxu0 0
    %251 = vmatpush1.bf16.msra.mxu0 %v232
    %252 = vmatprep.subr.bf16.mxu0 0
    %253 = vmatpush1.bf16.msra.mxu0 %v233
    %254 = vmatprep.subr.bf16.mxu0 0
    %255 = vmatpush1.bf16.msra.mxu0 %v234
    %256 = vmatprep.subr.bf16.mxu0 0
    %257 = vmatpush1.bf16.msra.mxu0 %v235
    %258 = vmatprep.subr.bf16.mxu0 0
    %259 = vmatpush1.bf16.msra.mxu0 %v236
    %260 = vmatprep.subr.bf16.mxu0 0
    %261 = vmatpush1.bf16.msra.mxu0 %v237
    %262 = vmatprep.subr.bf16.mxu0 0
    %263 = vmatpush1.bf16.msra.mxu0 0
    %264 = vmatprep.subr.bf16.mxu0 0
    %265 = vmatpush1.bf16.msra.mxu0 0
    %266 = vmatprep.subr.bf16.mxu0 0
    %267 = vmatpush1.bf16.msra.mxu0 0
    %268 = vmatprep.subr.bf16.mxu0 0
    %269 = vmatpush1.bf16.msra.mxu0 0
    %270 = vmatprep.subr.bf16.mxu0 0
    %271 = vmatpush1.bf16.msra.mxu0 0
    %272 = vmatprep.subr.bf16.mxu0 0
    %273 = vmatpush1.bf16.msra.mxu0 0
    %274 = vmatprep.subr.bf16.mxu0 0
    %275 = vmatpush1.bf16.msra.mxu0 0
    %276 = vmatprep.subr.bf16.mxu0 0
    %277 = vmatpush1.bf16.msra.mxu0 0
    %278 = vmatprep.mubr.bf16.mxu0 0
    %279 = vmatmul.mubr.bf16.gmra.mrb[0].mxu0 %v181
    %v280 = vpop.f32.mrb[0].mxu0
    %v281 = vadd.f32 0.0, %v280
    %v282 = vpop.f32.mrb[0].mxu0
    %v283 = vpop.f32.mrb[0].mxu0
    %v284 = vpop.f32.mrb[0].mxu0
    %285 = vdwg.mxu0
    %v286 = vtanh.pop %v281
    %v287 = vpack.c.bf16 %v286, %v286
    %v288 = vld [vmem:[#allocation8] sm:$0xf]
    %v289 = vld [vmem:[#allocation8 + $0x4] sm:$0xf]
    %v290 = vld [vmem:[#allocation8 + $0x8] sm:$0xf]
    %v291 = vld [vmem:[#allocation8 + $0xc] sm:$0xf]
    %v292 = vld [vmem:[#allocation8 + $0x10] sm:$0xf]
    %v293 = vld [vmem:[#allocation8 + $0x14] sm:$0xf]
    %v294 = vld [vmem:[#allocation8 + $0x18] sm:$0xf]
    %v295 = vld [vmem:[#allocation8 + $0x1c] sm:$0xf]
    %v296 = vld [vmem:[#allocation8 + $0x20] sm:$0xf]
    %v297 = vld [vmem:[#allocation8 + $0x24] sm:$0xf]
    %v298 = vld [vmem:[#allocation8 + $0x28] sm:$0xf]
    %v299 = vld [vmem:[#allocation8 + $0x2c] sm:$0xf]
    %v300 = vld [vmem:[#allocation8 + $0x30] sm:$0xf]
    %v301 = vld [vmem:[#allocation8 + $0x34] sm:$0xf]
    %v302 = vld [vmem:[#allocation8 + $0x38] sm:$0xf]
    %v303 = vld [vmem:[#allocation8 + $0x3c] sm:$0xf]
    %v304 = vld [vmem:[%s4] sm:$0x1]
    %v306 = vlaneseq
    %v307 = vshrl.u32 %v306, 7
    %v308 = vsub.s32 0, %v307
    %v309 = vrot.slane %v304, %v308
    %v327 = vunpack.c.l.b16 %v288
    %v328 = vunpack.c.l.b16 %v289
    %v329 = vunpack.c.l.b16 %v290
    %v330 = vunpack.c.l.b16 %v291
    %v331 = vunpack.c.l.b16 %v292
    %v332 = vunpack.c.l.b16 %v293
    %v333 = vunpack.c.l.b16 %v294
    %v334 = vunpack.c.l.b16 %v295
    %v335 = vunpack.c.l.b16 %v296
    %v336 = vunpack.c.l.b16 %v297
    %v337 = vunpack.c.l.b16 %v298
    %v338 = vunpack.c.l.b16 %v299
    %v339 = vunpack.c.l.b16 %v300
    %v340 = vunpack.c.l.b16 %v301
    %v341 = vunpack.c.l.b16 %v302
    %v342 = vunpack.c.l.b16 %v303
    %v343 = vpack.c.b16 %v328, %v327
    %v344 = vpack.c.b16 %v330, %v329
    %v345 = vpack.c.b16 %v332, %v331
    %v346 = vpack.c.b16 %v334, %v333
    %v347 = vpack.c.b16 %v336, %v335
    %v348 = vpack.c.b16 %v338, %v337
    %v349 = vpack.c.b16 %v340, %v339
    %v350 = vpack.c.b16 %v342, %v341
    %359 = vmatprep.subr.bf16.mxu0 0
    %360 = vmatpush1.bf16.msra.mxu0 %v343
    %361 = vmatprep.subr.bf16.mxu0 0
    %362 = vmatpush1.bf16.msra.mxu0 %v344
    %363 = vmatprep.subr.bf16.mxu0 0
    %364 = vmatpush1.bf16.msra.mxu0 %v345
    %365 = vmatprep.subr.bf16.mxu0 0
    %366 = vmatpush1.bf16.msra.mxu0 %v346
    %367 = vmatprep.subr.bf16.mxu0 0
    %368 = vmatpush1.bf16.msra.mxu0 %v347
    %369 = vmatprep.subr.bf16.mxu0 0
    %370 = vmatpush1.bf16.msra.mxu0 %v348
    %371 = vmatprep.subr.bf16.mxu0 0
    %372 = vmatpush1.bf16.msra.mxu0 %v349
    %373 = vmatprep.subr.bf16.mxu0 0
    %374 = vmatpush1.bf16.msra.mxu0 %v350
    %375 = vmatprep.subr.bf16.mxu0 0
    %376 = vmatpush1.bf16.msra.mxu0 0
    %377 = vmatprep.subr.bf16.mxu0 0
    %378 = vmatpush1.bf16.msra.mxu0 0
    %379 = vmatprep.subr.bf16.mxu0 0
    %380 = vmatpush1.bf16.msra.mxu0 0
    %381 = vmatprep.subr.bf16.mxu0 0
    %382 = vmatpush1.bf16.msra.mxu0 0
    %383 = vmatprep.subr.bf16.mxu0 0
    %384 = vmatpush1.bf16.msra.mxu0 0
    %385 = vmatprep.subr.bf16.mxu0 0
    %386 = vmatpush1.bf16.msra.mxu0 0
    %387 = vmatprep.subr.bf16.mxu0 0
    %388 = vmatpush1.bf16.msra.mxu0 0
    %389 = vmatprep.subr.bf16.mxu0 0
    %390 = vmatpush1.bf16.msra.mxu0 0
    %391 = vmatprep.mubr.bf16.mxu0 0
    %392 = vmatmul.mubr.bf16.gmra.mrb[0].mxu0 %v287
    %v393 = vpop.f32.mrb[0].mxu0
    %v394 = vadd.f32 %v309, %v393
    %v395 = vpop.f32.mrb[0].mxu0
    %v396 = vpop.f32.mrb[0].mxu0
    %v397 = vpop.f32.mrb[0].mxu0
    %398 = vdwg.mxu0
    %399 = vst [vmem:[#allocation10] sm:$0xff] %v394
    // Predicated region
    $region38: #{tpu_custom_call.1} parent=1 // pred_check
      _
    $region39: #{tpu_custom_call.1} parent=1 // pred_check_branch
      %401 = sbr.rel (0) target = $region41
    $region40: #{tpu_custom_call.1} parent=1 // pred_region
      %s403 = ssub.s32 128, 128
      %404 = vsyncadd [#allocation4], %s403
      %s406 = sshll.u32 [#allocation10], 4
      %s407 = int_to_ptr.vmem [resolvable:$true] %s406
      %409 = dma.vmem_to_hbm [thread:$0]  %s407, 128, %s5, [#allocation4]
    $region41: #{tpu_custom_call.1} parent=1 // pred_fallthru
      _
    // Predicated region
    $region42: #{tpu_custom_call.1} parent=1 // pred_check
      _
    $region43: #{tpu_custom_call.1} parent=1 // pred_check_branch
      %411 = sbr.rel (0) target = $region45
    $region44: #{tpu_custom_call.1} parent=1 // pred_region
      %412 = dma.done [#allocation4], 128
    $region45: #{tpu_custom_call.1} parent=1 // pred_fallthru
      _
    %413 = vsyncpa [#allocation3], 1
    %414 = vsyncpa [#allocation6], 1
    %415 = vsyncpa [#allocation9], 1
    %416 = vsyncpa [#allocation4], 1

</llo_original>
